<compile_context>
chip_gen: v5e
topology: v5e:2x2
jax: 0.10.0
libtpu: 0.0.40
codegen_flags: <defaults>
</compile_context>

<pallas_src>
import jax
import jax.numpy as jnp
from jax import lax
from jax.experimental import pallas as pl
from jax.experimental.pallas import tpu as pltpu


def _round_up(x, m):
    return ((x + m - 1) // m) * m


def _vmem_budget_bytes():
    """~80% of this chip's per-core VMEM (headroom for compiler scratch/DMA)."""
    cap = 64 * 1024 * 1024
    try:
        info = pltpu.get_tpu_info()
        cap = int(getattr(info, "vmem_capacity_bytes", cap))
    except Exception:
        pass
    return int(0.8 * cap)   # ~51 MiB on v7x (64 MiB/TC), ~102 MiB on v5e/v6e (128 MiB)


def _make_kernel(normalize_embeddings, compute_dtype):
    def kernel(w1_ref, w2_ref, w_ref, b_ref, o_ref):
        # w1_ref, w2_ref : [TB, E]     activation tiles, native dtype (streamed)
        # w_ref          : [2, E, Ep]  stacked transposed Linear-weight halves (resident)
        # b_ref          : [1, Ep]     bias, f32, zero-padded (resident)
        # o_ref          : [TB, Ep]    out_dtype output tile
        # Cast in-kernel (free VPU op) instead of a separate XLA pass over HBM.
        a1 = w1_ref[...].astype(compute_dtype)
        a2 = w2_ref[...].astype(compute_dtype)
        # concat(w1, w2) @ W.T  ==  w1 @ W[:, :E].T + w2 @ W[:, E:].T
        y = jnp.dot(a1, w_ref[0], preferred_element_type=jnp.float32)
        y = y + jnp.dot(a2, w_ref[1], preferred_element_type=jnp.float32)
        y = y + b_ref[...]

        # F.dropout with p = 0.0 -> identity.
        # TODO(synk): nonzero dropout_rate would need pltpu.prng_seed/prng_random_bits masking.

        if normalize_embeddings:
            # F.normalize(p=2, dim=1): y / max(||y||, 1e-12)
            # == y * rsqrt(max(||y||^2, 1e-24))  (one EUP op + VALU mul).
            # Padded lanes (if any) are exactly zero (zero weight cols / zero
            # bias), so they do not contribute to the norm.
            sq = jnp.sum(y * y, axis=1, keepdims=True)
            y = y * lax.rsqrt(jnp.maximum(sq, 1e-24))

        o_ref[...] = y.astype(o_ref.dtype)

    return kernel


def prepare_matrix_transfer_params(weight, bias, *, compute_dtype=jnp.bfloat16):
    """One-time (model-init) preprocessing of the pretrained nn.Linear params.

    weight : [E, 2E]  (PyTorch Linear layout [out_features, in_features])
    bias   : [E]
    Returns:
      w_stacked : [2, E, Ep] compute_dtype  (W.T split into the w1/w2 halves;
                                             output dim zero-padded to Ep only
                                             when E >= 128)
      b_padded  : [1, Ep] float32
    """
    e, two_e = weight.shape
    assert two_e == 2 * e, "expected PyTorch Linear weight of shape [E, 2E]"
    # Lane-pad the output/N dim only when it buys dense 128-lane stores; for
    # tiny E the padding would 4x+ the dominant output HBM stream.
    ep = e if e < 128 else _round_up(e, 128)
    w_t = jnp.transpose(weight)                 # [2E, E]; done once, not per call
    if ep != e:
        w_t = jnp.pad(w_t, ((0, 0), (0, ep - e)))   # zero-pad output columns
    w_stacked = w_t.reshape(2, e, ep).astype(compute_dtype)
    b_padded = jnp.pad(bias.astype(jnp.float32), (0, ep - e)).reshape(1, ep)
    return w_stacked, b_padded


def matrix_transfer_ranker_forward(w1, w2, w_stacked, b_padded, *,
                                   dropout_rate=0.0,
                                   normalize_embeddings=True,
                                   out_dtype=jnp.bfloat16,
                                   block_rows=2048):
    """w1, w2: [B, E] (native dtype); w_stacked/b_padded from prepare_matrix_transfer_params."""
    assert dropout_rate == 0.0, "only inference-style dropout (p=0) implemented"
    b, e = w1.shape
    assert w2.shape == (b, e)
    two, e_w, ep = w_stacked.shape
    assert two == 2 and e_w == e and b_padded.shape == (1, ep)
    compute_dtype = w_stacked.dtype

    # --- Per-generation VMEM budget and batch-tile selection -----------------
    in_bytes = jnp.dtype(w1.dtype).itemsize
    w_bytes = jnp.dtype(compute_dtype).itemsize
    out_bytes = jnp.dtype(out_dtype).itemsize
    vmem_budget = _vmem_budget_bytes()

    resident_bytes = 2 * e * ep * w_bytes + ep * 4          # weight + bias (1 buffer)
    per_row_bytes = 2 * (2 * e * in_bytes + ep * out_bytes)  # double-buffered streams
    # Conservatively count the resident weight twice (covers the double-buffered
    # fallback path below) when sizing the batch tile.
    if 2 * resident_bytes + 8 * per_row_bytes > vmem_budget:
        # TODO(synk): for very large E, add an inner "arbitrary" K-grid axis streaming
        # (2, tk, Ep) weight tiles into an f32 scratch accumulator with a
        # pl.when(k == last) bias-add + normalize finalize.
        raise ValueError("resident Linear weight does not fit the VMEM budget; "
                         "K-tiling over the contraction dim is not implemented")
    tb_cap = max((vmem_budget - 2 * resident_bytes) // per_row_bytes, 8)

    tb = min(int(block_rows), _round_up(b, 8), int(tb_cap))
    tb = max(8, (tb // 8) * 8)
    # Keep >= ~4 grid steps when the batch allows: feeds both v7x TensorCores
    # ("parallel" axis) and keeps each core's pipeline double-buffered.
    min_tiles = 4
    if b >= 8 * min_tiles:
        tb = min(tb, max(8, _round_up(-(-b // min_tiles), 8)))

    grid = (pl.cdiv(b, tb),)   # batch remainder handled by the grid, no pre-pad
    kernel = _make_kernel(normalize_embeddings, compute_dtype)

    stream_specs = [
        pl.BlockSpec((tb, e), lambda i: (i, 0)),        # w1 tile (streamed)
        pl.BlockSpec((tb, e), lambda i: (i, 0)),        # w2 tile (streamed)
    ]
    weight_map = lambda i: (0, 0, 0)                    # resident (constant index)
    bias_map = lambda i: (0, 0)

    def _build(in_specs):
        return pl.pallas_call(
            kernel,
            out_shape=jax.ShapeDtypeStruct((b, ep), out_dtype),
            grid_spec=pltpu.PrefetchScalarGridSpec(
                num_scalar_prefetch=0,
                grid=grid,
                in_specs=in_specs,
                out_specs=pl.BlockSpec((tb, ep), lambda i: (i, 0)),
            ),
            compiler_params=pltpu.CompilerParams(
                dimension_semantics=("parallel",),   # shard batch tiles across TCs (v7x)
                vmem_limit_bytes=int(vmem_budget),
            ),
        )

    try:
        # Resident weight/bias single-buffered: their block never changes, so the
        # default double-buffering only wastes VMEM (headroom for bigger tiles).
        in_specs = stream_specs + [
            pl.BlockSpec((2, e, ep), weight_map, pipeline_mode=pl.Buffered(1)),
            pl.BlockSpec((1, ep), bias_map, pipeline_mode=pl.Buffered(1)),
        ]
        out = _build(in_specs)(w1, w2, w_stacked, b_padded)
    except Exception:
        # Fallback if this JAX/Mosaic build rejects single-buffered BlockSpecs.
        in_specs = stream_specs + [
            pl.BlockSpec((2, e, ep), weight_map),
            pl.BlockSpec((1, ep), bias_map),
        ]
        out = _build(in_specs)(w1, w2, w_stacked, b_padded)

    # No batch padding to strip; strip lane padding only if it was added.
    return out if ep == e else out[:, :e]


if __name__ == "__main__":
    B, E = 40, 32  # small shapes; batch deliberately not a multiple of the tile

    key = jax.random.PRNGKey(0)
    k1, k2, kw, kb = jax.random.split(key, 4)
    w1 = jax.random.normal(k1, (B, E), dtype=jnp.float32)
    w2 = jax.random.normal(k2, (B, E), dtype=jnp.float32)
    # Deterministic "pretrained" Linear params: weight [out=E, in=2E], bias [E].
    weight = jax.random.normal(kw, (E, 2 * E), dtype=jnp.float32) * 0.05
    bias = jax.random.normal(kb, (E,), dtype=jnp.float32) * 0.01

    def reference(w1, w2, weight, bias):
        composed = jnp.concatenate([w1, w2], axis=1)
        y = composed @ weight.T + bias
        return y / jnp.maximum(jnp.linalg.norm(y, axis=1, keepdims=True), 1e-12)

    ref = reference(w1, w2, weight, bias)

    # f32 operand / f32 output path: exact parity with the PyTorch math.
    pw32, pb32 = prepare_matrix_transfer_params(weight, bias,
                                                compute_dtype=jnp.float32)
    out32 = matrix_transfer_ranker_forward(w1, w2, pw32, pb32,
                                           dropout_rate=0.0,
                                           normalize_embeddings=True,
                                           out_dtype=jnp.float32,
                                           block_rows=16)  # small tile -> exercises grid + boundary block
    out32 = jax.block_until_ready(out32)
    assert out32.shape == (B, E)
    assert jnp.allclose(out32, ref, atol=1e-5, rtol=1e-5), "f32 path mismatch"

    # Default perf path: bf16 operands, f32 accumulate/normalize, bf16 output.
    pw16, pb16 = prepare_matrix_transfer_params(weight, bias,
                                                compute_dtype=jnp.bfloat16)
    out16 = matrix_transfer_ranker_forward(w1, w2, pw16, pb16,
                                           dropout_rate=0.0,
                                           normalize_embeddings=True)
    out16 = jax.block_until_ready(out16)
    assert out16.shape == (B, E)
    assert jnp.allclose(out16.astype(jnp.float32), ref,
                        atol=2e-2, rtol=2e-2), "bf16 path mismatch"

    print("KERNEL_OK")
</pallas_src>

<mosaic_0001>
module attributes {stable_mosaic.version = 11 : i64} {
  func.func @kernel(%arg0: i32, %arg1: memref<16x32xf32, #tpu.memory_space<vmem>>, %arg2: memref<16x32xf32, #tpu.memory_space<vmem>>, %arg3: memref<2x32x32xf32, #tpu.memory_space<vmem>>, %arg4: memref<1x32xf32, #tpu.memory_space<vmem>>, %arg5: memref<16x32xf32, #tpu.memory_space<vmem>>) attributes {dimension_semantics = [#tpu.dimension_semantics<parallel>], iteration_bounds = array<i64: 3>, scalar_prefetch = 0 : i64, scratch_operands = 0 : i64, tpu.core_type = #tpu.core_type<tc>, window_params = [{transform_indices = @transform_0, window_bounds = array<i64: 16, 32>}, {transform_indices = @transform_1, window_bounds = array<i64: 16, 32>}, {pipeline_mode = #tpu.pipeline_mode<synchronous>, transform_indices = @transform_2, window_bounds = array<i64: 2, 32, 32>}, {pipeline_mode = #tpu.pipeline_mode<synchronous>, transform_indices = @transform_3, window_bounds = array<i64: 1, 32>}, {transform_indices = @transform_4, window_bounds = array<i64: 16, 32>}]} {
    %c0 = arith.constant 0 : index
    %c0_0 = arith.constant 0 : index
    %0 = vector.load %arg1[%c0, %c0_0] : memref<16x32xf32, #tpu.memory_space<vmem>>, vector<16x32xf32>
    %c0_1 = arith.constant 0 : index
    %c0_2 = arith.constant 0 : index
    %1 = vector.load %arg2[%c0_1, %c0_2] : memref<16x32xf32, #tpu.memory_space<vmem>>, vector<16x32xf32>
    %c0_3 = arith.constant 0 : index
    %c0_4 = arith.constant 0 : index
    %c0_5 = arith.constant 0 : index
    %2 = vector.load %arg3[%c0_3, %c0_4, %c0_5] : memref<2x32x32xf32, #tpu.memory_space<vmem>>, vector<1x32x32xf32>
    %3 = vector.shape_cast %2 : vector<1x32x32xf32> to vector<32x32xf32>
    %cst = arith.constant dense<0.000000e+00> : vector<16x32xf32>
    %4 = tpu.matmul %0, %3, %cst {dimension_numbers = #tpu.dot_dimension_numbers<[1], [0], [0], [1], [0, 0, 1, 1], [], []>} : vector<16x32xf32>, vector<32x32xf32>, vector<16x32xf32> -> vector<16x32xf32>
    %c1 = arith.constant 1 : index
    %c0_6 = arith.constant 0 : index
    %c0_7 = arith.constant 0 : index
    %5 = vector.load %arg3[%c1, %c0_6, %c0_7] : memref<2x32x32xf32, #tpu.memory_space<vmem>>, vector<1x32x32xf32>
    %6 = vector.shape_cast %5 : vector<1x32x32xf32> to vector<32x32xf32>
    %cst_8 = arith.constant dense<0.000000e+00> : vector<16x32xf32>
    %7 = tpu.matmul %1, %6, %cst_8 {dimension_numbers = #tpu.dot_dimension_numbers<[1], [0], [0], [1], [0, 0, 1, 1], [], []>} : vector<16x32xf32>, vector<32x32xf32>, vector<16x32xf32> -> vector<16x32xf32>
    %8 = arith.addf %4, %7 : vector<16x32xf32>
    %c0_9 = arith.constant 0 : index
    %c0_10 = arith.constant 0 : index
    %9 = vector.load %arg4[%c0_9, %c0_10] : memref<1x32xf32, #tpu.memory_space<vmem>>, vector<1x32xf32>
    %10 = vector.broadcast %9 : vector<1x32xf32> to vector<16x32xf32>
    %11 = arith.addf %8, %10 : vector<16x32xf32>
    %12 = arith.mulf %11, %11 : vector<16x32xf32>
    %cst_11 = arith.constant dense<0.000000e+00> : vector<16xf32>
    %13 = vector.multi_reduction <add>, %12, %cst_11 [1] : vector<16x32xf32> to vector<16xf32>
    %14 = vector.shape_cast %13 : vector<16xf32> to vector<16x1xf32>
    %cst_12 = arith.constant 1.000000e-24 : f32
    %15 = vector.broadcast %cst_12 : f32 to vector<16x1xf32>
    %16 = arith.maximumf %14, %15 : vector<16x1xf32>
    %17 = math.rsqrt %16 : vector<16x1xf32>
    %18 = vector.broadcast %17 : vector<16x1xf32> to vector<16x32xf32>
    %19 = arith.mulf %11, %18 : vector<16x32xf32>
    %c0_13 = arith.constant 0 : index
    %c0_14 = arith.constant 0 : index
    %20 = vector.load %arg5[%c0_13, %c0_14] : memref<16x32xf32, #tpu.memory_space<vmem>>, vector<16x32xf32>
    tpu.vector_store %arg5[%c0_13, %c0_14], %19 {strides = array<i32>} : memref<16x32xf32, #tpu.memory_space<vmem>>, vector<16x32xf32>,
    return
  }
  func.func @transform_0(%arg0: i32) -> (i32, i32) {
    %c0_i32 = arith.constant 0 : i32
    %c0_i32_0 = arith.constant 0 : i32
    return %arg0, %c0_i32 : i32, i32
  }
  func.func @transform_1(%arg0: i32) -> (i32, i32) {
    %c0_i32 = arith.constant 0 : i32
    %c0_i32_0 = arith.constant 0 : i32
    return %arg0, %c0_i32 : i32, i32
  }
  func.func @transform_2(%arg0: i32) -> (i32, i32, i32) {
    %c0_i32 = arith.constant 0 : i32
    %c0_i32_0 = arith.constant 0 : i32
    %c0_i32_1 = arith.constant 0 : i32
    %c0_i32_2 = arith.constant 0 : i32
    return %c0_i32, %c0_i32_0, %c0_i32_1 : i32, i32, i32
  }
  func.func @transform_3(%arg0: i32) -> (i32, i32) {
    %c0_i32 = arith.constant 0 : i32
    %c0_i32_0 = arith.constant 0 : i32
    %c0_i32_1 = arith.constant 0 : i32
    return %c0_i32, %c0_i32_0 : i32, i32
  }
  func.func @transform_4(%arg0: i32) -> (i32, i32) {
    %c0_i32 = arith.constant 0 : i32
    %c0_i32_0 = arith.constant 0 : i32
    return %arg0, %c0_i32 : i32, i32
  }
}

module attributes {stable_mosaic.version = 11 : i64} {
  func.func @kernel(%arg0: i32, %arg1: memref<16x32xf32, #tpu.memory_space<vmem>>, %arg2: memref<16x32xf32, #tpu.memory_space<vmem>>, %arg3: memref<2x32x32xf32, #tpu.memory_space<vmem>>, %arg4: memref<1x32xf32, #tpu.memory_space<vmem>>, %arg5: memref<16x32xf32, #tpu.memory_space<vmem>>) attributes {dimension_semantics = [#tpu.dimension_semantics<parallel>], iteration_bounds = array<i64: 3>, scalar_prefetch = 0 : i64, scratch_operands = 0 : i64, tpu.core_type = #tpu.core_type<tc>, window_params = [{transform_indices = @transform_0, window_bounds = array<i64: 16, 32>}, {transform_indices = @transform_1, window_bounds = array<i64: 16, 32>}, {pipeline_mode = #tpu.pipeline_mode<synchronous>, transform_indices = @transform_2, window_bounds = array<i64: 2, 32, 32>}, {pipeline_mode = #tpu.pipeline_mode<synchronous>, transform_indices = @transform_3, window_bounds = array<i64: 1, 32>}, {transform_indices = @transform_4, window_bounds = array<i64: 16, 32>}]} {
    %c0 = arith.constant 0 : index
    %c0_0 = arith.constant 0 : index
    %0 = vector.load %arg1[%c0, %c0_0] : memref<16x32xf32, #tpu.memory_space<vmem>>, vector<16x32xf32>
    %c0_1 = arith.constant 0 : index
    %c0_2 = arith.constant 0 : index
    %1 = vector.load %arg2[%c0_1, %c0_2] : memref<16x32xf32, #tpu.memory_space<vmem>>, vector<16x32xf32>
    %c0_3 = arith.constant 0 : index
    %c0_4 = arith.constant 0 : index
    %c0_5 = arith.constant 0 : index
    %2 = vector.load %arg3[%c0_3, %c0_4, %c0_5] : memref<2x32x32xf32, #tpu.memory_space<vmem>>, vector<1x32x32xf32>
    %3 = vector.shape_cast %2 : vector<1x32x32xf32> to vector<32x32xf32>
    %cst = arith.constant dense<0.000000e+00> : vector<16x32xf32>
    %4 = tpu.matmul %0, %3, %cst {dimension_numbers = #tpu.dot_dimension_numbers<[1], [0], [0], [1], [0, 0, 1, 1], [], []>} : vector<16x32xf32>, vector<32x32xf32>, vector<16x32xf32> -> vector<16x32xf32>
    %c1 = arith.constant 1 : index
    %c0_6 = arith.constant 0 : index
    %c0_7 = arith.constant 0 : index
    %5 = vector.load %arg3[%c1, %c0_6, %c0_7] : memref<2x32x32xf32, #tpu.memory_space<vmem>>, vector<1x32x32xf32>
    %6 = vector.shape_cast %5 : vector<1x32x32xf32> to vector<32x32xf32>
    %cst_8 = arith.constant dense<0.000000e+00> : vector<16x32xf32>
    %7 = tpu.matmul %1, %6, %cst_8 {dimension_numbers = #tpu.dot_dimension_numbers<[1], [0], [0], [1], [0, 0, 1, 1], [], []>} : vector<16x32xf32>, vector<32x32xf32>, vector<16x32xf32> -> vector<16x32xf32>
    %8 = arith.addf %4, %7 : vector<16x32xf32>
    %c0_9 = arith.constant 0 : index
    %c0_10 = arith.constant 0 : index
    %9 = vector.load %arg4[%c0_9, %c0_10] : memref<1x32xf32, #tpu.memory_space<vmem>>, vector<1x32xf32>
    %10 = vector.broadcast %9 : vector<1x32xf32> to vector<16x32xf32>
    %11 = arith.addf %8, %10 : vector<16x32xf32>
    %12 = arith.mulf %11, %11 : vector<16x32xf32>
    %cst_11 = arith.constant dense<0.000000e+00> : vector<16xf32>
    %13 = vector.multi_reduction <add>, %12, %cst_11 [1] : vector<16x32xf32> to vector<16xf32>
    %14 = vector.shape_cast %13 : vector<16xf32> to vector<16x1xf32>
    %cst_12 = arith.constant 1.000000e-24 : f32
    %15 = vector.broadcast %cst_12 : f32 to vector<16x1xf32>
    %16 = arith.maximumf %14, %15 : vector<16x1xf32>
    %17 = math.rsqrt %16 : vector<16x1xf32>
    %18 = vector.broadcast %17 : vector<16x1xf32> to vector<16x32xf32>
    %19 = arith.mulf %11, %18 : vector<16x32xf32>
    %c0_13 = arith.constant 0 : index
    %c0_14 = arith.constant 0 : index
    %20 = vector.load %arg5[%c0_13, %c0_14] : memref<16x32xf32, #tpu.memory_space<vmem>>, vector<16x32xf32>
    tpu.vector_store %arg5[%c0_13, %c0_14], %19 {strides = array<i32>} : memref<16x32xf32, #tpu.memory_space<vmem>>, vector<16x32xf32>,
    return
  }
  func.func @transform_0(%arg0: i32) -> (i32, i32) {
    %c0_i32 = arith.constant 0 : i32
    %c0_i32_0 = arith.constant 0 : i32
    return %arg0, %c0_i32 : i32, i32
  }
  func.func @transform_1(%arg0: i32) -> (i32, i32) {
    %c0_i32 = arith.constant 0 : i32
    %c0_i32_0 = arith.constant 0 : i32
    return %arg0, %c0_i32 : i32, i32
  }
  func.func @transform_2(%arg0: i32) -> (i32, i32, i32) {
    %c0_i32 = arith.constant 0 : i32
    %c0_i32_0 = arith.constant 0 : i32
    %c0_i32_1 = arith.constant 0 : i32
    %c0_i32_2 = arith.constant 0 : i32
    return %c0_i32, %c0_i32_0, %c0_i32_1 : i32, i32, i32
  }
  func.func @transform_3(%arg0: i32) -> (i32, i32) {
    %c0_i32 = arith.constant 0 : i32
    %c0_i32_0 = arith.constant 0 : i32
    %c0_i32_1 = arith.constant 0 : i32
    return %c0_i32, %c0_i32_0 : i32, i32
  }
  func.func @transform_4(%arg0: i32) -> (i32, i32) {
    %c0_i32 = arith.constant 0 : i32
    %c0_i32_0 = arith.constant 0 : i32
    return %arg0, %c0_i32 : i32, i32
  }
}

</mosaic_0001>

<llo_original>
// kernel: tpu_custom_call.1
$region0: #{tpu_custom_call.1}
  #allocation0 [shape = 'u32[]', space=smem, size = 0x4, offset = 0x4, fixed_abs, tag = 'smem constant byte address 0x4 - core index']
  #allocation1 [shape = 'u32[72,128]{1,0:T(1,128)}', space=vmem, size = 0x9000, scoped, tag = 'internal scratch']
  %s0 = inlined_call_operand.vmem [shape: f32[40,32], index: 0, kind: input, shape index: {}]
  %s1 = inlined_call_operand.vmem [shape: f32[40,32], index: 1, kind: input, shape index: {}]
  %s2 = inlined_call_operand.vmem [shape: f32[2,32,32], index: 2, kind: input, shape index: {}]
  %s3 = inlined_call_operand.vmem [shape: f32[1,32], index: 3, kind: input, shape index: {}]
  %s4 = inlined_call_operand.vmem [shape: f32[40,32], index: 4, kind: output, shape index: {}]
  %s5 = sld [smem:[#allocation0]]
  $region97: #{tpu_custom_call.1} parent=0
    _
  %s7 = ssub.s32 1, %s5
  %s8 = scalar_select 0, %s7, %s5
  $region1: #{tpu_custom_call.1} parent=0
    #allocation2 [shape = 'u8[16384]{0}', space=vmem, size = 0x4000, scoped, tag = 'output window, operand 0']
    loop: start=0, step=1, limit=5
    $region2: #{tpu_custom_call.1} parent=1 // loop_pre_header
      _
    $region3: #{tpu_custom_call.1} parent=1 // loop_header
      %s10 = sphi 0, %s14
      %p11 = scmp.ge.s32.totalorder %s10, 5
      %s20 = sphi 0, %s22
      %s23 = sphi 0, %s20
      %s24 = sphi 0, %s23
      %s40 = sphi 0, %s24
      %s46 = sphi 0, %s48
      %s49 = sphi 0, %s46
      %s50 = sphi 0, %s49
      %s66 = sphi 0, %s50
      %s70 = sphi 0, %s70
      %s72 = sphi 0, %s70
      %s73 = sphi 0, %s72
      %s87 = sphi 0, %s73
      %s91 = sphi 0, %s91
      %s93 = sphi 0, %s91
      %s94 = sphi 0, %s93
      %s108 = sphi 0, %s94
      %s114 = sphi 0, %s116
      %s117 = sphi 0, %s114
      %s118 = sphi 0, %s117
      %s134 = sphi 0, %s118
    $region4: #{tpu_custom_call.1} parent=1 // loop_header_branch
      %13 = sbr.rel (%p11) target = $region8
    $region5: #{tpu_custom_call.1} parent=1 // loop_body
      %s15 = ssub.s32 %s10, 1
      %s16 = ssub.s32 %s10, 2
      %s17 = sadd.s32 %s10, 1
      %s18 = ssub.s32 %s10, %s17
      %p19 = scmp.eq.s32.totalorder %s18, 0
      %s21 = sadd.s32 %s20, 1
      %s22 = scalar_select %p19, %s20, %s21
      %p25 = pneg %p19
      %p26 = scmp.eq.s32.totalorder %s10, 2
      %p27 = por %p25, %p26
      %p28 = scmp.ne.s32.totalorder %s20, %s23
      %p29 = scmp.eq.s32.totalorder %s10, 0
      %p30 = por %p28, %p29
      %p31 = scmp.ne.s32.totalorder %s20, %s23
      %p32 = scmp.eq.s32.totalorder %s15, 2
      %p33 = por %p31, %p32
      %p34 = scmp.ne.s32.totalorder %s23, %s24
      %p35 = scmp.eq.s32.totalorder %s15, 0
      %p36 = por %p34, %p35
      %p37 = scmp.ne.s32.totalorder %s23, %s24
      %p38 = scmp.eq.s32.totalorder %s16, 2
      %p39 = por %p37, %p38
      %p41 = scmp.ne.s32.totalorder %s24, %s40
      %p42 = scmp.eq.s32.totalorder %s16, 0
      %p43 = por %p41, %p42
      %s44 = ssub.s32 %s10, %s17
      %p45 = scmp.eq.s32.totalorder %s44, 0
      %s47 = sadd.s32 %s46, 1
      %s48 = scalar_select %p45, %s46, %s47
      %p51 = pneg %p45
      %p52 = scmp.eq.s32.totalorder %s10, 2
      %p53 = por %p51, %p52
      %p54 = scmp.ne.s32.totalorder %s46, %s49
      %p55 = scmp.eq.s32.totalorder %s10, 0
      %p56 = por %p54, %p55
      %p57 = scmp.ne.s32.totalorder %s46, %s49
      %p58 = scmp.eq.s32.totalorder %s15, 2
      %p59 = por %p57, %p58
      %p60 = scmp.ne.s32.totalorder %s49, %s50
      %p61 = scmp.eq.s32.totalorder %s15, 0
      %p62 = por %p60, %p61
      %p63 = scmp.ne.s32.totalorder %s49, %s50
      %p64 = scmp.eq.s32.totalorder %s16, 2
      %p65 = por %p63, %p64
      %p67 = scmp.ne.s32.totalorder %s50, %s66
      %p68 = scmp.eq.s32.totalorder %s16, 0
      %p69 = por %p67, %p68
      %s71 = sadd.s32 %s70, 1
      %p74 = scmp.eq.s32.totalorder %s10, 2
      %p75 = scmp.ne.s32.totalorder %s70, %s72
      %p76 = scmp.eq.s32.totalorder %s10, 0
      %p77 = por %p75, %p76
      %p78 = scmp.ne.s32.totalorder %s70, %s72
      %p79 = scmp.eq.s32.totalorder %s15, 2
      %p80 = por %p78, %p79
      %p81 = scmp.ne.s32.totalorder %s72, %s73
      %p82 = scmp.eq.s32.totalorder %s15, 0
      %p83 = por %p81, %p82
      %p84 = scmp.ne.s32.totalorder %s72, %s73
      %p85 = scmp.eq.s32.totalorder %s16, 2
      %p86 = por %p84, %p85
      %p88 = scmp.ne.s32.totalorder %s73, %s87
      %p89 = scmp.eq.s32.totalorder %s16, 0
      %p90 = por %p88, %p89
      %s92 = sadd.s32 %s91, 1
      %p95 = scmp.eq.s32.totalorder %s10, 2
      %p96 = scmp.ne.s32.totalorder %s91, %s93
      %p97 = scmp.eq.s32.totalorder %s10, 0
      %p98 = por %p96, %p97
      %p99 = scmp.ne.s32.totalorder %s91, %s93
      %p100 = scmp.eq.s32.totalorder %s15, 2
      %p101 = por %p99, %p100
      %p102 = scmp.ne.s32.totalorder %s93, %s94
      %p103 = scmp.eq.s32.totalorder %s15, 0
      %p104 = por %p102, %p103
      %p105 = scmp.ne.s32.totalorder %s93, %s94
      %p106 = scmp.eq.s32.totalorder %s16, 2
      %p107 = por %p105, %p106
      %p109 = scmp.ne.s32.totalorder %s94, %s108
      %p110 = scmp.eq.s32.totalorder %s16, 0
      %p111 = por %p109, %p110
      %s112 = ssub.s32 %s10, %s17
      %p113 = scmp.eq.s32.totalorder %s112, 0
      %s115 = sadd.s32 %s114, 1
      %s116 = scalar_select %p113, %s114, %s115
      %p119 = pneg %p113
      %p120 = scmp.eq.s32.totalorder %s10, 2
      %p121 = por %p119, %p120
      %p122 = scmp.ne.s32.totalorder %s114, %s117
      %p123 = scmp.eq.s32.totalorder %s10, 0
      %p124 = por %p122, %p123
      %p125 = scmp.ne.s32.totalorder %s114, %s117
      %p126 = scmp.eq.s32.totalorder %s15, 2
      %p127 = por %p125, %p126
      %p128 = scmp.ne.s32.totalorder %s117, %s118
      %p129 = scmp.eq.s32.totalorder %s15, 0
      %p130 = por %p128, %p129
      %p131 = scmp.ne.s32.totalorder %s117, %s118
      %p132 = scmp.eq.s32.totalorder %s16, 2
      %p133 = por %p131, %p132
      %p135 = scmp.ne.s32.totalorder %s118, %s134
      %p136 = scmp.eq.s32.totalorder %s16, 0
      %p137 = por %p135, %p136
      %p138 = scmp.le.s32.totalorder 1, %s10
      %p139 = scmp.lt.s32.totalorder %s10, 4
      %p140 = pnand %p138, %p139
      %p141 = pneg %p140
      // Predicated region
      $region9: #{tpu_custom_call.1} parent=5 // pred_check
        _
      $region10: #{tpu_custom_call.1} parent=5 // pred_check_branch
        %143 = sbr.rel (%p140) target = $region12
      $region11: #{tpu_custom_call.1} parent=5 // pred_region
        %s144 = ssub.s32 %s10, 1
        // Predicated region
        $region13: #{tpu_custom_call.1} parent=11 // pred_check
          %p145 = pneg %p83
        $region14: #{tpu_custom_call.1} parent=11 // pred_check_branch
          %147 = sbr.rel (%p145) target = $region16
        $region15: #{tpu_custom_call.1} parent=11 // pred_region
          _
        $region16: #{tpu_custom_call.1} parent=11 // pred_fallthru
          _
        // Predicated region
        $region17: #{tpu_custom_call.1} parent=11 // pred_check
          %p148 = pneg %p104
        $region18: #{tpu_custom_call.1} parent=11 // pred_check_branch
          %150 = sbr.rel (%p148) target = $region20
        $region19: #{tpu_custom_call.1} parent=11 // pred_region
          _
        $region20: #{tpu_custom_call.1} parent=11 // pred_fallthru
          _
      $region12: #{tpu_custom_call.1} parent=5 // pred_fallthru
        _
      %p151 = scmp.lt.s32.totalorder %s10, 3
      // Predicated region
      $region21: #{tpu_custom_call.1} parent=5 // pred_check
        %p152 = pneg %p151
      $region22: #{tpu_custom_call.1} parent=5 // pred_check_branch
        %154 = sbr.rel (%p152) target = $region24
      $region23: #{tpu_custom_call.1} parent=5 // pred_region
        // Predicated region
        $region25: #{tpu_custom_call.1} parent=23 // pred_check
          %p155 = pneg %p30
        $region26: #{tpu_custom_call.1} parent=23 // pred_check_branch
          %157 = sbr.rel (%p155) target = $region28
        $region27: #{tpu_custom_call.1} parent=23 // pred_region
          %s158 = smul.u32 2, %s10
          %s159 = ssub.s32 5, %s158
          %p160 = scmp.lt.s32.totalorder %s159, 2
          %s161 = scalar_select %p160, %s159, 2
          %s162 = smul.u32 8, %s161
          %p163 = scmp.lt.s32.totalorder %s158, 4
          %s164 = scalar_select %p163, %s158, 4
          %s165 = smul.addr %s164, 8
          %s166 = scalar_lea.vmem %s0, %s165
          %s167 = smul.u32 2, %s10
          %s168 = ssub.s32 5, %s167
          %p169 = scmp.lt.s32.totalorder %s168, 2
          %s170 = scalar_select %p169, %s168, 2
          %s171 = smul.u32 8, %s170
        $region28: #{tpu_custom_call.1} parent=23 // pred_fallthru
          _
        // Predicated region
        $region29: #{tpu_custom_call.1} parent=23 // pred_check
          %p172 = pneg %p56
        $region30: #{tpu_custom_call.1} parent=23 // pred_check_branch
          %174 = sbr.rel (%p172) target = $region32
        $region31: #{tpu_custom_call.1} parent=23 // pred_region
          %s175 = smul.u32 2, %s10
          %s176 = ssub.s32 5, %s175
          %p177 = scmp.lt.s32.totalorder %s176, 2
          %s178 = scalar_select %p177, %s176, 2
          %s179 = smul.u32 8, %s178
          %p180 = scmp.lt.s32.totalorder %s175, 4
          %s181 = scalar_select %p180, %s175, 4
          %s182 = smul.addr %s181, 8
          %s183 = scalar_lea.vmem %s1, %s182
          %s184 = smul.u32 2, %s10
          %s185 = ssub.s32 5, %s184
          %p186 = scmp.lt.s32.totalorder %s185, 2
          %s187 = scalar_select %p186, %s185, 2
          %s188 = smul.u32 8, %s187
        $region32: #{tpu_custom_call.1} parent=23 // pred_fallthru
          _
      $region24: #{tpu_custom_call.1} parent=5 // pred_fallthru
        _
      %p189 = scmp.le.s32.totalorder 1, %s10
      %p190 = scmp.lt.s32.totalorder %s10, 4
      %p191 = pnand %p189, %p190
      %p192 = pneg %p191
      // Predicated region
      $region33: #{tpu_custom_call.1} parent=5 // pred_check
        _
      $region34: #{tpu_custom_call.1} parent=5 // pred_check_branch
        %194 = sbr.rel (%p191) target = $region36
      $region35: #{tpu_custom_call.1} parent=5 // pred_region
        %s195 = ssub.s32 %s10, 1
        %s196 = smul.u32 2, %s15
        %s197 = ssub.s32 5, %s196
        %p198 = scmp.lt.s32.totalorder %s197, 2
        %s199 = scalar_select %p198, %s197, 2
        %s200 = smul.u32 8, %s199
        %p201 = scmp.lt.s32.totalorder %s196, 4
        %s202 = scalar_select %p201, %s196, 4
        %s203 = smul.addr %s202, 8
        %s204 = scalar_lea.vmem %s0, %s203
        %p205 = pneg %p36
        %p206 = pneg %p33
        %s207 = smul.u32 2, %s15
        %s208 = ssub.s32 5, %s207
        %p209 = scmp.lt.s32.totalorder %s208, 2
        %s210 = scalar_select %p209, %s208, 2
        %s211 = smul.u32 8, %s210
        %p212 = scmp.lt.s32.totalorder %s207, 4
        %s213 = scalar_select %p212, %s207, 4
        %s214 = smul.addr %s213, 8
        %s215 = scalar_lea.vmem %s1, %s214
        %p216 = pneg %p62
        %p217 = pneg %p59
        %p218 = pneg %p83
        %p219 = pneg %p80
        %p220 = pneg %p104
        %p221 = pneg %p101
        %p222 = pneg %p130
        %p223 = pneg %p127
        %s224 = sand.u32 %s117, 1
        %s225 = sand.u32 %s117, 1
        %s226 = smul.addr %s225, 16
        %s227 = scalar_lea.vmem [#allocation2], %s226
        %s228 = smul.u32 2, %s15
        %s229 = ssub.s32 5, %s228
        %p230 = scmp.lt.s32.totalorder %s229, 2
        %s231 = scalar_select %p230, %s229, 2
        %s232 = smul.u32 8, %s231
        %p233 = scmp.lt.s32.totalorder %s228, 4
        %s234 = scalar_select %p233, %s228, 4
        %s235 = smul.addr %s234, 8
        %s236 = scalar_lea.vmem %s0, %s235
        %s237 = smul.u32 2, %s15
        %s238 = ssub.s32 5, %s237
        %p239 = scmp.lt.s32.totalorder %s238, 2
        %s240 = scalar_select %p239, %s238, 2
        %s241 = smul.u32 8, %s240
        %s242 = smul.u32 2, %s15
        %s243 = ssub.s32 5, %s242
        %p244 = scmp.lt.s32.totalorder %s243, 2
        %s245 = scalar_select %p244, %s243, 2
        %s246 = smul.u32 8, %s245
        %p247 = scmp.lt.s32.totalorder %s242, 4
        %s248 = scalar_select %p247, %s242, 4
        %s249 = smul.addr %s248, 8
        %s250 = scalar_lea.vmem %s1, %s249
        %s251 = smul.u32 2, %s15
        %s252 = ssub.s32 5, %s251
        %p253 = scmp.lt.s32.totalorder %s252, 2
        %s254 = scalar_select %p253, %s252, 2
        %s255 = smul.u32 8, %s254
        %s256 = smul.u32 2, %s15
        %s257 = ssub.s32 5, %s256
        %p258 = scmp.lt.s32.totalorder %s257, 2
        %s259 = scalar_select %p258, %s257, 2
        %s260 = smul.u32 8, %s259
        %v261 = vld [vmem:[%s236] sm:$0xff]
        %v262 = vld [vmem:[%s236 + $0x8] sm:$0xff]
        %v263 = vld [vmem:[%s250] sm:$0xff]
        %v264 = vld [vmem:[%s250 + $0x8] sm:$0xff]
        %v265 = vld [vmem:[%s2] sm:$0xff]
        %v266 = vld [vmem:[%s2 + $0x8] sm:$0xff]
        %v267 = vld [vmem:[%s2 + $0x10] sm:$0xff]
        %v268 = vld [vmem:[%s2 + $0x18] sm:$0xff]
        %s269 = scalar_lea.vmem %s2, 32
        %v270 = vld [vmem:[%s269] sm:$0xff]
        %v271 = vld [vmem:[%s269 + $0x8] sm:$0xff]
        %v272 = vld [vmem:[%s269 + $0x10] sm:$0xff]
        %v273 = vld [vmem:[%s269 + $0x18] sm:$0xff]
        %vm274 = vcmask 261120
        %v276 = vsel %vm274, %v263, 0
        %v279 = vsel %vm274, %v264, 0
        %281 = vmatpush.msra.mxu0 0.0
        %282 = vmatpush.msra.mxu0 0.0
        %283 = vmatpush.msra.mxu0 0.0
        %284 = vmatpush.msra.mxu0 0.0
        %285 = vmatpush.msra.mxu0 0.0
        %286 = vmatpush.msra.mxu0 0.0
        %287 = vmatpush.msra.mxu0 0.0
        %288 = vmatpush.msra.mxu0 0.0
        %289 = vmatpush.msra.mxu0 0.0
        %290 = vmatpush.msra.mxu0 0.0
        %291 = vmatpush.msra.mxu0 0.0
        %292 = vmatpush.msra.mxu0 0.0
        %293 = vmatpush.msra.mxu0 %v273
        %294 = vmatpush.msra.mxu0 %v272
        %295 = vmatpush.msra.mxu0 %v271
        %296 = vmatpush.msra.mxu0 %v270
        %297 = vmatmul.f32.gmra.mxu0 %v276
        %v298 = vpop.f32.mrf.mxu0
        %v299 = vadd.f32 0.0, %v298
        %300 = vmatmul.f32.gmra.mxu0 %v279
        %v301 = vpop.f32.mrf.mxu0
        %v302 = vadd.f32 0.0, %v301
        %303 = vdwg.mxu0
        %v305 = vsel %vm274, %v261, 0
        %v308 = vsel %vm274, %v262, 0
        %310 = vmatpush.msra.mxu0 0.0
        %311 = vmatpush.msra.mxu0 0.0
        %312 = vmatpush.msra.mxu0 0.0
        %313 = vmatpush.msra.mxu0 0.0
        %314 = vmatpush.msra.mxu0 0.0
        %315 = vmatpush.msra.mxu0 0.0
        %316 = vmatpush.msra.mxu0 0.0
        %317 = vmatpush.msra.mxu0 0.0
        %318 = vmatpush.msra.mxu0 0.0
        %319 = vmatpush.msra.mxu0 0.0
        %320 = vmatpush.msra.mxu0 0.0
        %321 = vmatpush.msra.mxu0 0.0
        %322 = vmatpush.msra.mxu0 %v268
        %323 = vmatpush.msra.mxu0 %v267
        %324 = vmatpush.msra.mxu0 %v266
        %325 = vmatpush.msra.mxu0 %v265
        %326 = vmatmul.f32.gmra.mxu0 %v305
        %v327 = vpop.f32.mrf.mxu0
        %v328 = vadd.f32 %v299, %v327
        %329 = vmatmul.f32.gmra.mxu0 %v308
        %v330 = vpop.f32.mrf.mxu0
        %v331 = vadd.f32 %v302, %v330
        %332 = vdwg.mxu0
        %v333 = vld [vmem:[%s3] sm:$0x1]
        %v335 = vperm.slane %v333, 0
        %v337 = vadd.f32 %v328, %v335
        %v338 = vadd.f32 %v331, %v335
        %v339 = vmul.f32 %v337, %v337
        %v340 = vmul.f32 %v338, %v338
        %v341 = vsel %vm274, %v339, 0.0
        %342 = vadd.xlane.f32.xlu0 %v341
        %v343 = vpop.xlane.xlu0 %342
        %v344 = vsel %vm274, %v340, 0.0
        %345 = vadd.xlane.f32.xlu0 %v344
        %v346 = vpop.xlane.xlu0 %345
        %v347 = vmax.f32 %v343, 1e-24
        %v348 = vmax.f32 %v346, 1e-24
        %v349 = vrsqrt.pop %v347
        %v350 = vmul.f32 %v349, %v347
        %v351 = vmul.f32 %v350, %v349
        %v352 = vmul.f32 0.5, %v351
        %v353 = vsub.f32 1.5, %v352
        %v354 = vmul.f32 %v349, %v353
        %vm355 = vweird.f32 %v347
        %vm356 = vweird.f32 %v349
        %vm357 = vmor %vm355, %vm356
        %v358 = vsel %vm357, %v349, %v354
        %v359 = vrsqrt.pop %v348
        %v360 = vmul.f32 %v359, %v348
        %v361 = vmul.f32 %v360, %v359
        %v362 = vmul.f32 0.5, %v361
        %v363 = vsub.f32 1.5, %v362
        %v364 = vmul.f32 %v359, %v363
        %vm365 = vweird.f32 %v348
        %vm366 = vweird.f32 %v359
        %vm367 = vmor %vm365, %vm366
        %v368 = vsel %vm367, %v359, %v364
        %v369 = vmul.f32 %v337, %v358
        %v370 = vmul.f32 %v338, %v368
        %371 = vst.msk [vmem:[%s227] sm:$0xff] %vm274, %v369
        %372 = vst.msk [vmem:[%s227 + $0x8] sm:$0xff] %vm274, %v370
        %s373 = sand.u32 %s117, 1
        %s374 = sand.u32 %s117, 1
        %s375 = smul.addr %s374, 16
        %s376 = scalar_lea.vmem [#allocation2], %s375
        // Predicated region
        $region37: #{tpu_custom_call.1} parent=35 // pred_check
          %p377 = pneg %p127
        $region38: #{tpu_custom_call.1} parent=35 // pred_check_branch
          %379 = sbr.rel (%p377) target = $region40
        $region39: #{tpu_custom_call.1} parent=35 // pred_region
          %s380 = smul.u32 2, %s15
          %s381 = ssub.s32 5, %s380
          %p382 = scmp.lt.s32.totalorder %s381, 2
          %s383 = scalar_select %p382, %s381, 2
          %s384 = smul.u32 8, %s383
          %p385 = scmp.ne.s32.totalorder 0, %s384
          %s386 = smul.addr %s380, 8
          %s387 = scalar_lea.vmem %s4, %s386
          // Predicated region
          $region41: #{tpu_custom_call.1} parent=39 // pred_check
            %p388 = pneg %p385
          $region42: #{tpu_custom_call.1} parent=39 // pred_check_branch
            %390 = sbr.rel (%p388) target = $region44
          $region43: #{tpu_custom_call.1} parent=39 // pred_region
            // Predicated region
            $region45: #{tpu_custom_call.1} parent=43 // pred_check
              _
            $region46: #{tpu_custom_call.1} parent=43 // pred_check_branch
              %392 = sbr.rel (0) target = $region48
            $region47: #{tpu_custom_call.1} parent=43 // pred_region
              // Predicated region
              $region67: #{tpu_custom_call.1} parent=47 // pred_check
                _
              $region68: #{tpu_custom_call.1} parent=47 // pred_check_branch
                %444 = sbr.rel (0) target = $region70
              $region69: #{tpu_custom_call.1} parent=47 // pred_region
                %s445 = sshrl.u32 %s383, 1
                // While loop
                $region71: #{tpu_custom_call.1} parent=69 // loop_pre_header
                  _
                $region72: #{tpu_custom_call.1} parent=69 // loop_header
                  %s447 = sphi 0, %s449
                  %p448 = scmp.ge.s32.totalorder %s447, %s445
                  %s452 = sphi 0, %s461
                  %s453 = sphi %s376, %s464
                  %s454 = sphi %s387, %s465
                $region73: #{tpu_custom_call.1} parent=69 // loop_header_branch
                  %451 = sbr.rel (%p448) target = $region77
                $region74: #{tpu_custom_call.1} parent=69 // loop_body
                  %v455 = vld [vmem:[%s453] sm:$0xff]
                  %456 = vst [vmem:[%s454] sm:$0xff] %v455
                  %v457 = vld [vmem:[%s453 + $0x8] sm:$0xff]
                  %458 = vst [vmem:[%s454 + $0x8] sm:$0xff] %v457
                  %s459 = sadd.s32 1, %s452
                  %p460 = scmp.ge.s32.totalorder %s459, %s445
                  %s461 = scalar_select %p460, 0, %s459
                  %s462 = smul.u32 %s461, 16
                  %s463 = smul.u32 %s461, 16
                  %s464 = scalar_lea.vmem %s376, %s462 [#allocation2]
                  %s465 = scalar_lea.vmem %s387, %s463
                $region75: #{tpu_custom_call.1} parent=69 // loop_footer
                  %s449 = sadd.s32 %s447, 1
                $region76: #{tpu_custom_call.1} parent=69 // loop_footer_branch
                  %446 = sbr.rel target = $region72
                $region77: #{tpu_custom_call.1} parent=69 // loop_exit
                  _
                %s466 = sshrl.u32 %s383, 1
                %s467 = sand.u32 %s383, 1
                %s468 = smul.u32 %s466, 2
                %s469 = smul.u32 8, %s468
                %s470 = scalar_lea.vmem %s376, %s469 [#allocation2]
                %s471 = smul.u32 8, %s468
                %s472 = scalar_lea.vmem %s387, %s471
                // While loop
                $region78: #{tpu_custom_call.1} parent=69 // loop_pre_header
                  _
                $region79: #{tpu_custom_call.1} parent=69 // loop_header
                  %s474 = sphi 0, %s476
                  %p475 = scmp.ge.s32.totalorder %s474, %s467
                  %s479 = sphi 0, %s486
                  %s480 = sphi %s470, %s489
                  %s481 = sphi %s472, %s490
                $region80: #{tpu_custom_call.1} parent=69 // loop_header_branch
                  %478 = sbr.rel (%p475) target = $region84
                $region81: #{tpu_custom_call.1} parent=69 // loop_body
                  %v482 = vld [vmem:[%s480] sm:$0xff]
                  %483 = vst [vmem:[%s481] sm:$0xff] %v482
                  %s484 = sadd.s32 1, %s479
                  %p485 = scmp.ge.s32.totalorder %s484, %s467
                  %s486 = scalar_select %p485, 0, %s484
                  %s487 = smul.u32 %s486, 8
                  %s488 = smul.u32 %s486, 8
                  %s489 = scalar_lea.vmem %s470, %s487 [#allocation2]
                  %s490 = scalar_lea.vmem %s472, %s488
                $region82: #{tpu_custom_call.1} parent=69 // loop_footer
                  %s476 = sadd.s32 %s474, 1
                $region83: #{tpu_custom_call.1} parent=69 // loop_footer_branch
                  %473 = sbr.rel target = $region79
                $region84: #{tpu_custom_call.1} parent=69 // loop_exit
                  _
              $region70: #{tpu_custom_call.1} parent=47 // pred_fallthru
                _
              // Predicated region
              $region85: #{tpu_custom_call.1} parent=47 // pred_check
                _
              $region86: #{tpu_custom_call.1} parent=47 // pred_check_branch
                %492 = sbr.rel target = $region88
              $region87: #{tpu_custom_call.1} parent=47 // pred_region
                _
              $region88: #{tpu_custom_call.1} parent=47 // pred_fallthru
                _
            $region48: #{tpu_custom_call.1} parent=43 // pred_fallthru
              _
            // Predicated region
            $region49: #{tpu_custom_call.1} parent=43 // pred_check
              _
            $region50: #{tpu_custom_call.1} parent=43 // pred_check_branch
              %394 = sbr.rel target = $region52
            $region51: #{tpu_custom_call.1} parent=43 // pred_region
              %s396 = ssub.s32 256, 1
              %s397 = sshrl.u32 %s383, 1
              // While loop
              $region53: #{tpu_custom_call.1} parent=51 // loop_pre_header
                _
              $region54: #{tpu_custom_call.1} parent=51 // loop_header
                %s399 = sphi 0, %s401
                %p400 = scmp.ge.s32.totalorder %s399, %s397
                %s404 = sphi 0, %s413
                %s405 = sphi %s376, %s416
                %s406 = sphi %s387, %s417
              $region55: #{tpu_custom_call.1} parent=51 // loop_header_branch
                %403 = sbr.rel (%p400) target = $region59
              $region56: #{tpu_custom_call.1} parent=51 // loop_body
                %v407 = vld [vmem:[%s405] sm:%s396]
                %408 = vst [vmem:[%s406] sm:%s396] %v407
                %v409 = vld [vmem:[%s405 + $0x8] sm:%s396]
                %410 = vst [vmem:[%s406 + $0x8] sm:%s396] %v409
                %s411 = sadd.s32 1, %s404
                %p412 = scmp.ge.s32.totalorder %s411, %s397
                %s413 = scalar_select %p412, 0, %s411
                %s414 = smul.u32 %s413, 16
                %s415 = smul.u32 %s413, 16
                %s416 = scalar_lea.vmem %s376, %s414 [#allocation2]
                %s417 = scalar_lea.vmem %s387, %s415
              $region57: #{tpu_custom_call.1} parent=51 // loop_footer
                %s401 = sadd.s32 %s399, 1
              $region58: #{tpu_custom_call.1} parent=51 // loop_footer_branch
                %398 = sbr.rel target = $region54
              $region59: #{tpu_custom_call.1} parent=51 // loop_exit
                _
              %s418 = sshrl.u32 %s383, 1
              %s419 = sand.u32 %s383, 1
              %s420 = smul.u32 %s418, 2
              %s421 = smul.u32 8, %s420
              %s422 = scalar_lea.vmem %s376, %s421 [#allocation2]
              %s423 = smul.u32 8, %s420
              %s424 = scalar_lea.vmem %s387, %s423
              // While loop
              $region60: #{tpu_custom_call.1} parent=51 // loop_pre_header
                _
              $region61: #{tpu_custom_call.1} parent=51 // loop_header
                %s426 = sphi 0, %s428
                %p427 = scmp.ge.s32.totalorder %s426, %s419
                %s431 = sphi 0, %s438
                %s432 = sphi %s422, %s441
                %s433 = sphi %s424, %s442
              $region62: #{tpu_custom_call.1} parent=51 // loop_header_branch
                %430 = sbr.rel (%p427) target = $region66
              $region63: #{tpu_custom_call.1} parent=51 // loop_body
                %v434 = vld [vmem:[%s432] sm:%s396]
                %435 = vst [vmem:[%s433] sm:%s396] %v434
                %s436 = sadd.s32 1, %s431
                %p437 = scmp.ge.s32.totalorder %s436, %s419
                %s438 = scalar_select %p437, 0, %s436
                %s439 = smul.u32 %s438, 8
                %s440 = smul.u32 %s438, 8
                %s441 = scalar_lea.vmem %s422, %s439 [#allocation2]
                %s442 = scalar_lea.vmem %s424, %s440
              $region64: #{tpu_custom_call.1} parent=51 // loop_footer
                %s428 = sadd.s32 %s426, 1
              $region65: #{tpu_custom_call.1} parent=51 // loop_footer_branch
                %425 = sbr.rel target = $region61
              $region66: #{tpu_custom_call.1} parent=51 // loop_exit
                _
            $region52: #{tpu_custom_call.1} parent=43 // pred_fallthru
              _
          $region44: #{tpu_custom_call.1} parent=39 // pred_fallthru
            _
          %493 = vnop
        $region40: #{tpu_custom_call.1} parent=35 // pred_fallthru
          _
      $region36: #{tpu_custom_call.1} parent=5 // pred_fallthru
        _
      %p494 = scmp.le.s32.totalorder 2, %s10
      // Predicated region
      $region89: #{tpu_custom_call.1} parent=5 // pred_check
        %p495 = pneg %p494
      $region90: #{tpu_custom_call.1} parent=5 // pred_check_branch
        %497 = sbr.rel (%p495) target = $region92
      $region91: #{tpu_custom_call.1} parent=5 // pred_region
        %s498 = ssub.s32 %s10, 2
        // Predicated region
        $region93: #{tpu_custom_call.1} parent=91 // pred_check
          %p499 = pneg %p133
        $region94: #{tpu_custom_call.1} parent=91 // pred_check_branch
          %501 = sbr.rel (%p499) target = $region96
        $region95: #{tpu_custom_call.1} parent=91 // pred_region
          %s502 = sand.u32 %s118, 1
          %s503 = sand.u32 %s118, 1
          %s504 = smul.addr %s503, 16
          %s505 = scalar_lea.vmem [#allocation2], %s504
        $region96: #{tpu_custom_call.1} parent=91 // pred_fallthru
          _
      $region92: #{tpu_custom_call.1} parent=5 // pred_fallthru
        _
    $region6: #{tpu_custom_call.1} parent=1 // loop_footer
      %s14 = sadd.s32 1, %s10
    $region7: #{tpu_custom_call.1} parent=1 // loop_footer_branch
      %9 = sbr.rel target = $region3
    $region8: #{tpu_custom_call.1} parent=1 // loop_exit
      _

// kernel: tpu_custom_call.1
$region0: #{tpu_custom_call.1}
  #allocation0 [shape = 'u32[]', space=smem, size = 0x4, offset = 0x4, fixed_abs, tag = 'smem constant byte address 0x4 - core index']
  #allocation1 [shape = 'u32[72,128]{1,0:T(1,128)}', space=vmem, size = 0x9000, scoped, tag = 'internal scratch']
  %s0 = inlined_call_operand.vmem [shape: f32[40,32], index: 0, kind: input, shape index: {}]
  %s1 = inlined_call_operand.vmem [shape: f32[40,32], index: 1, kind: input, shape index: {}]
  %s2 = inlined_call_operand.vmem [shape: f32[2,32,32], index: 2, kind: input, shape index: {}]
  %s3 = inlined_call_operand.vmem [shape: f32[1,32], index: 3, kind: input, shape index: {}]
  %s4 = inlined_call_operand.vmem [shape: f32[40,32], index: 4, kind: output, shape index: {}]
  %s5 = sld [smem:[#allocation0]]
  $region97: #{tpu_custom_call.1} parent=0
    _
  %s7 = ssub.s32 1, %s5
  %s8 = scalar_select 0, %s7, %s5
  $region1: #{tpu_custom_call.1} parent=0
    #allocation2 [shape = 'u8[16384]{0}', space=vmem, size = 0x4000, scoped, tag = 'output window, operand 0']
    loop: start=0, step=1, limit=5
    $region2: #{tpu_custom_call.1} parent=1 // loop_pre_header
      _
    $region3: #{tpu_custom_call.1} parent=1 // loop_header
      %s10 = sphi 0, %s14
      %p11 = scmp.ge.s32.totalorder %s10, 5
      %s20 = sphi 0, %s22
      %s23 = sphi 0, %s20
      %s24 = sphi 0, %s23
      %s40 = sphi 0, %s24
      %s46 = sphi 0, %s48
      %s49 = sphi 0, %s46
      %s50 = sphi 0, %s49
      %s66 = sphi 0, %s50
      %s70 = sphi 0, %s70
      %s72 = sphi 0, %s70
      %s73 = sphi 0, %s72
      %s87 = sphi 0, %s73
      %s91 = sphi 0, %s91
      %s93 = sphi 0, %s91
      %s94 = sphi 0, %s93
      %s108 = sphi 0, %s94
      %s114 = sphi 0, %s116
      %s117 = sphi 0, %s114
      %s118 = sphi 0, %s117
      %s134 = sphi 0, %s118
    $region4: #{tpu_custom_call.1} parent=1 // loop_header_branch
      %13 = sbr.rel (%p11) target = $region8
    $region5: #{tpu_custom_call.1} parent=1 // loop_body
      %s15 = ssub.s32 %s10, 1
      %s16 = ssub.s32 %s10, 2
      %s17 = sadd.s32 %s10, 1
      %s18 = ssub.s32 %s10, %s17
      %p19 = scmp.eq.s32.totalorder %s18, 0
      %s21 = sadd.s32 %s20, 1
      %s22 = scalar_select %p19, %s20, %s21
      %p25 = pneg %p19
      %p26 = scmp.eq.s32.totalorder %s10, 2
      %p27 = por %p25, %p26
      %p28 = scmp.ne.s32.totalorder %s20, %s23
      %p29 = scmp.eq.s32.totalorder %s10, 0
      %p30 = por %p28, %p29
      %p31 = scmp.ne.s32.totalorder %s20, %s23
      %p32 = scmp.eq.s32.totalorder %s15, 2
      %p33 = por %p31, %p32
      %p34 = scmp.ne.s32.totalorder %s23, %s24
      %p35 = scmp.eq.s32.totalorder %s15, 0
      %p36 = por %p34, %p35
      %p37 = scmp.ne.s32.totalorder %s23, %s24
      %p38 = scmp.eq.s32.totalorder %s16, 2
      %p39 = por %p37, %p38
      %p41 = scmp.ne.s32.totalorder %s24, %s40
      %p42 = scmp.eq.s32.totalorder %s16, 0
      %p43 = por %p41, %p42
      %s44 = ssub.s32 %s10, %s17
      %p45 = scmp.eq.s32.totalorder %s44, 0
      %s47 = sadd.s32 %s46, 1
      %s48 = scalar_select %p45, %s46, %s47
      %p51 = pneg %p45
      %p52 = scmp.eq.s32.totalorder %s10, 2
      %p53 = por %p51, %p52
      %p54 = scmp.ne.s32.totalorder %s46, %s49
      %p55 = scmp.eq.s32.totalorder %s10, 0
      %p56 = por %p54, %p55
      %p57 = scmp.ne.s32.totalorder %s46, %s49
      %p58 = scmp.eq.s32.totalorder %s15, 2
      %p59 = por %p57, %p58
      %p60 = scmp.ne.s32.totalorder %s49, %s50
      %p61 = scmp.eq.s32.totalorder %s15, 0
      %p62 = por %p60, %p61
      %p63 = scmp.ne.s32.totalorder %s49, %s50
      %p64 = scmp.eq.s32.totalorder %s16, 2
      %p65 = por %p63, %p64
      %p67 = scmp.ne.s32.totalorder %s50, %s66
      %p68 = scmp.eq.s32.totalorder %s16, 0
      %p69 = por %p67, %p68
      %s71 = sadd.s32 %s70, 1
      %p74 = scmp.eq.s32.totalorder %s10, 2
      %p75 = scmp.ne.s32.totalorder %s70, %s72
      %p76 = scmp.eq.s32.totalorder %s10, 0
      %p77 = por %p75, %p76
      %p78 = scmp.ne.s32.totalorder %s70, %s72
      %p79 = scmp.eq.s32.totalorder %s15, 2
      %p80 = por %p78, %p79
      %p81 = scmp.ne.s32.totalorder %s72, %s73
      %p82 = scmp.eq.s32.totalorder %s15, 0
      %p83 = por %p81, %p82
      %p84 = scmp.ne.s32.totalorder %s72, %s73
      %p85 = scmp.eq.s32.totalorder %s16, 2
      %p86 = por %p84, %p85
      %p88 = scmp.ne.s32.totalorder %s73, %s87
      %p89 = scmp.eq.s32.totalorder %s16, 0
      %p90 = por %p88, %p89
      %s92 = sadd.s32 %s91, 1
      %p95 = scmp.eq.s32.totalorder %s10, 2
      %p96 = scmp.ne.s32.totalorder %s91, %s93
      %p97 = scmp.eq.s32.totalorder %s10, 0
      %p98 = por %p96, %p97
      %p99 = scmp.ne.s32.totalorder %s91, %s93
      %p100 = scmp.eq.s32.totalorder %s15, 2
      %p101 = por %p99, %p100
      %p102 = scmp.ne.s32.totalorder %s93, %s94
      %p103 = scmp.eq.s32.totalorder %s15, 0
      %p104 = por %p102, %p103
      %p105 = scmp.ne.s32.totalorder %s93, %s94
      %p106 = scmp.eq.s32.totalorder %s16, 2
      %p107 = por %p105, %p106
      %p109 = scmp.ne.s32.totalorder %s94, %s108
      %p110 = scmp.eq.s32.totalorder %s16, 0
      %p111 = por %p109, %p110
      %s112 = ssub.s32 %s10, %s17
      %p113 = scmp.eq.s32.totalorder %s112, 0
      %s115 = sadd.s32 %s114, 1
      %s116 = scalar_select %p113, %s114, %s115
      %p119 = pneg %p113
      %p120 = scmp.eq.s32.totalorder %s10, 2
      %p121 = por %p119, %p120
      %p122 = scmp.ne.s32.totalorder %s114, %s117
      %p123 = scmp.eq.s32.totalorder %s10, 0
      %p124 = por %p122, %p123
      %p125 = scmp.ne.s32.totalorder %s114, %s117
      %p126 = scmp.eq.s32.totalorder %s15, 2
      %p127 = por %p125, %p126
      %p128 = scmp.ne.s32.totalorder %s117, %s118
      %p129 = scmp.eq.s32.totalorder %s15, 0
      %p130 = por %p128, %p129
      %p131 = scmp.ne.s32.totalorder %s117, %s118
      %p132 = scmp.eq.s32.totalorder %s16, 2
      %p133 = por %p131, %p132
      %p135 = scmp.ne.s32.totalorder %s118, %s134
      %p136 = scmp.eq.s32.totalorder %s16, 0
      %p137 = por %p135, %p136
      %p138 = scmp.le.s32.totalorder 1, %s10
      %p139 = scmp.lt.s32.totalorder %s10, 4
      %p140 = pnand %p138, %p139
      %p141 = pneg %p140
      // Predicated region
      $region9: #{tpu_custom_call.1} parent=5 // pred_check
        _
      $region10: #{tpu_custom_call.1} parent=5 // pred_check_branch
        %143 = sbr.rel (%p140) target = $region12
      $region11: #{tpu_custom_call.1} parent=5 // pred_region
        %s144 = ssub.s32 %s10, 1
        // Predicated region
        $region13: #{tpu_custom_call.1} parent=11 // pred_check
          %p145 = pneg %p83
        $region14: #{tpu_custom_call.1} parent=11 // pred_check_branch
          %147 = sbr.rel (%p145) target = $region16
        $region15: #{tpu_custom_call.1} parent=11 // pred_region
          _
        $region16: #{tpu_custom_call.1} parent=11 // pred_fallthru
          _
        // Predicated region
        $region17: #{tpu_custom_call.1} parent=11 // pred_check
          %p148 = pneg %p104
        $region18: #{tpu_custom_call.1} parent=11 // pred_check_branch
          %150 = sbr.rel (%p148) target = $region20
        $region19: #{tpu_custom_call.1} parent=11 // pred_region
          _
        $region20: #{tpu_custom_call.1} parent=11 // pred_fallthru
          _
      $region12: #{tpu_custom_call.1} parent=5 // pred_fallthru
        _
      %p151 = scmp.lt.s32.totalorder %s10, 3
      // Predicated region
      $region21: #{tpu_custom_call.1} parent=5 // pred_check
        %p152 = pneg %p151
      $region22: #{tpu_custom_call.1} parent=5 // pred_check_branch
        %154 = sbr.rel (%p152) target = $region24
      $region23: #{tpu_custom_call.1} parent=5 // pred_region
        // Predicated region
        $region25: #{tpu_custom_call.1} parent=23 // pred_check
          %p155 = pneg %p30
        $region26: #{tpu_custom_call.1} parent=23 // pred_check_branch
          %157 = sbr.rel (%p155) target = $region28
        $region27: #{tpu_custom_call.1} parent=23 // pred_region
          %s158 = smul.u32 2, %s10
          %s159 = ssub.s32 5, %s158
          %p160 = scmp.lt.s32.totalorder %s159, 2
          %s161 = scalar_select %p160, %s159, 2
          %s162 = smul.u32 8, %s161
          %p163 = scmp.lt.s32.totalorder %s158, 4
          %s164 = scalar_select %p163, %s158, 4
          %s165 = smul.addr %s164, 8
          %s166 = scalar_lea.vmem %s0, %s165
          %s167 = smul.u32 2, %s10
          %s168 = ssub.s32 5, %s167
          %p169 = scmp.lt.s32.totalorder %s168, 2
          %s170 = scalar_select %p169, %s168, 2
          %s171 = smul.u32 8, %s170
        $region28: #{tpu_custom_call.1} parent=23 // pred_fallthru
          _
        // Predicated region
        $region29: #{tpu_custom_call.1} parent=23 // pred_check
          %p172 = pneg %p56
        $region30: #{tpu_custom_call.1} parent=23 // pred_check_branch
          %174 = sbr.rel (%p172) target = $region32
        $region31: #{tpu_custom_call.1} parent=23 // pred_region
          %s175 = smul.u32 2, %s10
          %s176 = ssub.s32 5, %s175
          %p177 = scmp.lt.s32.totalorder %s176, 2
          %s178 = scalar_select %p177, %s176, 2
          %s179 = smul.u32 8, %s178
          %p180 = scmp.lt.s32.totalorder %s175, 4
          %s181 = scalar_select %p180, %s175, 4
          %s182 = smul.addr %s181, 8
          %s183 = scalar_lea.vmem %s1, %s182
          %s184 = smul.u32 2, %s10
          %s185 = ssub.s32 5, %s184
          %p186 = scmp.lt.s32.totalorder %s185, 2
          %s187 = scalar_select %p186, %s185, 2
          %s188 = smul.u32 8, %s187
        $region32: #{tpu_custom_call.1} parent=23 // pred_fallthru
          _
      $region24: #{tpu_custom_call.1} parent=5 // pred_fallthru
        _
      %p189 = scmp.le.s32.totalorder 1, %s10
      %p190 = scmp.lt.s32.totalorder %s10, 4
      %p191 = pnand %p189, %p190
      %p192 = pneg %p191
      // Predicated region
      $region33: #{tpu_custom_call.1} parent=5 // pred_check
        _
      $region34: #{tpu_custom_call.1} parent=5 // pred_check_branch
        %194 = sbr.rel (%p191) target = $region36
      $region35: #{tpu_custom_call.1} parent=5 // pred_region
        %s195 = ssub.s32 %s10, 1
        %s196 = smul.u32 2, %s15
        %s197 = ssub.s32 5, %s196
        %p198 = scmp.lt.s32.totalorder %s197, 2
        %s199 = scalar_select %p198, %s197, 2
        %s200 = smul.u32 8, %s199
        %p201 = scmp.lt.s32.totalorder %s196, 4
        %s202 = scalar_select %p201, %s196, 4
        %s203 = smul.addr %s202, 8
        %s204 = scalar_lea.vmem %s0, %s203
        %p205 = pneg %p36
        %p206 = pneg %p33
        %s207 = smul.u32 2, %s15
        %s208 = ssub.s32 5, %s207
        %p209 = scmp.lt.s32.totalorder %s208, 2
        %s210 = scalar_select %p209, %s208, 2
        %s211 = smul.u32 8, %s210
        %p212 = scmp.lt.s32.totalorder %s207, 4
        %s213 = scalar_select %p212, %s207, 4
        %s214 = smul.addr %s213, 8
        %s215 = scalar_lea.vmem %s1, %s214
        %p216 = pneg %p62
        %p217 = pneg %p59
        %p218 = pneg %p83
        %p219 = pneg %p80
        %p220 = pneg %p104
        %p221 = pneg %p101
        %p222 = pneg %p130
        %p223 = pneg %p127
        %s224 = sand.u32 %s117, 1
        %s225 = sand.u32 %s117, 1
        %s226 = smul.addr %s225, 16
        %s227 = scalar_lea.vmem [#allocation2], %s226
        %s228 = smul.u32 2, %s15
        %s229 = ssub.s32 5, %s228
        %p230 = scmp.lt.s32.totalorder %s229, 2
        %s231 = scalar_select %p230, %s229, 2
        %s232 = smul.u32 8, %s231
        %p233 = scmp.lt.s32.totalorder %s228, 4
        %s234 = scalar_select %p233, %s228, 4
        %s235 = smul.addr %s234, 8
        %s236 = scalar_lea.vmem %s0, %s235
        %s237 = smul.u32 2, %s15
        %s238 = ssub.s32 5, %s237
        %p239 = scmp.lt.s32.totalorder %s238, 2
        %s240 = scalar_select %p239, %s238, 2
        %s241 = smul.u32 8, %s240
        %s242 = smul.u32 2, %s15
        %s243 = ssub.s32 5, %s242
        %p244 = scmp.lt.s32.totalorder %s243, 2
        %s245 = scalar_select %p244, %s243, 2
        %s246 = smul.u32 8, %s245
        %p247 = scmp.lt.s32.totalorder %s242, 4
        %s248 = scalar_select %p247, %s242, 4
        %s249 = smul.addr %s248, 8
        %s250 = scalar_lea.vmem %s1, %s249
        %s251 = smul.u32 2, %s15
        %s252 = ssub.s32 5, %s251
        %p253 = scmp.lt.s32.totalorder %s252, 2
        %s254 = scalar_select %p253, %s252, 2
        %s255 = smul.u32 8, %s254
        %s256 = smul.u32 2, %s15
        %s257 = ssub.s32 5, %s256
        %p258 = scmp.lt.s32.totalorder %s257, 2
        %s259 = scalar_select %p258, %s257, 2
        %s260 = smul.u32 8, %s259
        %v261 = vld [vmem:[%s236] sm:$0xff]
        %v262 = vld [vmem:[%s236 + $0x8] sm:$0xff]
        %v263 = vld [vmem:[%s250] sm:$0xff]
        %v264 = vld [vmem:[%s250 + $0x8] sm:$0xff]
        %v265 = vld [vmem:[%s2] sm:$0xff]
        %v266 = vld [vmem:[%s2 + $0x8] sm:$0xff]
        %v267 = vld [vmem:[%s2 + $0x10] sm:$0xff]
        %v268 = vld [vmem:[%s2 + $0x18] sm:$0xff]
        %s269 = scalar_lea.vmem %s2, 32
        %v270 = vld [vmem:[%s269] sm:$0xff]
        %v271 = vld [vmem:[%s269 + $0x8] sm:$0xff]
        %v272 = vld [vmem:[%s269 + $0x10] sm:$0xff]
        %v273 = vld [vmem:[%s269 + $0x18] sm:$0xff]
        %vm274 = vcmask 261120
        %v276 = vsel %vm274, %v263, 0
        %v279 = vsel %vm274, %v264, 0
        %281 = vmatpush.msra.mxu0 0.0
        %282 = vmatpush.msra.mxu0 0.0
        %283 = vmatpush.msra.mxu0 0.0
        %284 = vmatpush.msra.mxu0 0.0
        %285 = vmatpush.msra.mxu0 0.0
        %286 = vmatpush.msra.mxu0 0.0
        %287 = vmatpush.msra.mxu0 0.0
        %288 = vmatpush.msra.mxu0 0.0
        %289 = vmatpush.msra.mxu0 0.0
        %290 = vmatpush.msra.mxu0 0.0
        %291 = vmatpush.msra.mxu0 0.0
        %292 = vmatpush.msra.mxu0 0.0
        %293 = vmatpush.msra.mxu0 %v273
        %294 = vmatpush.msra.mxu0 %v272
        %295 = vmatpush.msra.mxu0 %v271
        %296 = vmatpush.msra.mxu0 %v270
        %297 = vmatmul.f32.gmra.mxu0 %v276
        %v298 = vpop.f32.mrf.mxu0
        %v299 = vadd.f32 0.0, %v298
        %300 = vmatmul.f32.gmra.mxu0 %v279
        %v301 = vpop.f32.mrf.mxu0
        %v302 = vadd.f32 0.0, %v301
        %303 = vdwg.mxu0
        %v305 = vsel %vm274, %v261, 0
        %v308 = vsel %vm274, %v262, 0
        %310 = vmatpush.msra.mxu0 0.0
        %311 = vmatpush.msra.mxu0 0.0
        %312 = vmatpush.msra.mxu0 0.0
        %313 = vmatpush.msra.mxu0 0.0
        %314 = vmatpush.msra.mxu0 0.0
        %315 = vmatpush.msra.mxu0 0.0
        %316 = vmatpush.msra.mxu0 0.0
        %317 = vmatpush.msra.mxu0 0.0
        %318 = vmatpush.msra.mxu0 0.0
        %319 = vmatpush.msra.mxu0 0.0
        %320 = vmatpush.msra.mxu0 0.0
        %321 = vmatpush.msra.mxu0 0.0
        %322 = vmatpush.msra.mxu0 %v268
        %323 = vmatpush.msra.mxu0 %v267
        %324 = vmatpush.msra.mxu0 %v266
        %325 = vmatpush.msra.mxu0 %v265
        %326 = vmatmul.f32.gmra.mxu0 %v305
        %v327 = vpop.f32.mrf.mxu0
        %v328 = vadd.f32 %v299, %v327
        %329 = vmatmul.f32.gmra.mxu0 %v308
        %v330 = vpop.f32.mrf.mxu0
        %v331 = vadd.f32 %v302, %v330
        %332 = vdwg.mxu0
        %v333 = vld [vmem:[%s3] sm:$0x1]
        %v335 = vperm.slane %v333, 0
        %v337 = vadd.f32 %v328, %v335
        %v338 = vadd.f32 %v331, %v335
        %v339 = vmul.f32 %v337, %v337
        %v340 = vmul.f32 %v338, %v338
        %v341 = vsel %vm274, %v339, 0.0
        %342 = vadd.xlane.f32.xlu0 %v341
        %v343 = vpop.xlane.xlu0 %342
        %v344 = vsel %vm274, %v340, 0.0
        %345 = vadd.xlane.f32.xlu0 %v344
        %v346 = vpop.xlane.xlu0 %345
        %v347 = vmax.f32 %v343, 1e-24
        %v348 = vmax.f32 %v346, 1e-24
        %v349 = vrsqrt.pop %v347
        %v350 = vmul.f32 %v349, %v347
        %v351 = vmul.f32 %v350, %v349
        %v352 = vmul.f32 0.5, %v351
        %v353 = vsub.f32 1.5, %v352
        %v354 = vmul.f32 %v349, %v353
        %vm355 = vweird.f32 %v347
        %vm356 = vweird.f32 %v349
        %vm357 = vmor %vm355, %vm356
        %v358 = vsel %vm357, %v349, %v354
        %v359 = vrsqrt.pop %v348
        %v360 = vmul.f32 %v359, %v348
        %v361 = vmul.f32 %v360, %v359
        %v362 = vmul.f32 0.5, %v361
        %v363 = vsub.f32 1.5, %v362
        %v364 = vmul.f32 %v359, %v363
        %vm365 = vweird.f32 %v348
        %vm366 = vweird.f32 %v359
        %vm367 = vmor %vm365, %vm366
        %v368 = vsel %vm367, %v359, %v364
        %v369 = vmul.f32 %v337, %v358
        %v370 = vmul.f32 %v338, %v368
        %371 = vst.msk [vmem:[%s227] sm:$0xff] %vm274, %v369
        %372 = vst.msk [vmem:[%s227 + $0x8] sm:$0xff] %vm274, %v370
        %s373 = sand.u32 %s117, 1
        %s374 = sand.u32 %s117, 1
        %s375 = smul.addr %s374, 16
        %s376 = scalar_lea.vmem [#allocation2], %s375
        // Predicated region
        $region37: #{tpu_custom_call.1} parent=35 // pred_check
          %p377 = pneg %p127
        $region38: #{tpu_custom_call.1} parent=35 // pred_check_branch
          %379 = sbr.rel (%p377) target = $region40
        $region39: #{tpu_custom_call.1} parent=35 // pred_region
          %s380 = smul.u32 2, %s15
          %s381 = ssub.s32 5, %s380
          %p382 = scmp.lt.s32.totalorder %s381, 2
          %s383 = scalar_select %p382, %s381, 2
          %s384 = smul.u32 8, %s383
          %p385 = scmp.ne.s32.totalorder 0, %s384
          %s386 = smul.addr %s380, 8
          %s387 = scalar_lea.vmem %s4, %s386
          // Predicated region
          $region41: #{tpu_custom_call.1} parent=39 // pred_check
            %p388 = pneg %p385
          $region42: #{tpu_custom_call.1} parent=39 // pred_check_branch
            %390 = sbr.rel (%p388) target = $region44
          $region43: #{tpu_custom_call.1} parent=39 // pred_region
            // Predicated region
            $region45: #{tpu_custom_call.1} parent=43 // pred_check
              _
            $region46: #{tpu_custom_call.1} parent=43 // pred_check_branch
              %392 = sbr.rel (0) target = $region48
            $region47: #{tpu_custom_call.1} parent=43 // pred_region
              // Predicated region
              $region67: #{tpu_custom_call.1} parent=47 // pred_check
                _
              $region68: #{tpu_custom_call.1} parent=47 // pred_check_branch
                %444 = sbr.rel (0) target = $region70
              $region69: #{tpu_custom_call.1} parent=47 // pred_region
                %s445 = sshrl.u32 %s383, 1
                // While loop
                $region71: #{tpu_custom_call.1} parent=69 // loop_pre_header
                  _
                $region72: #{tpu_custom_call.1} parent=69 // loop_header
                  %s447 = sphi 0, %s449
                  %p448 = scmp.ge.s32.totalorder %s447, %s445
                  %s452 = sphi 0, %s461
                  %s453 = sphi %s376, %s464
                  %s454 = sphi %s387, %s465
                $region73: #{tpu_custom_call.1} parent=69 // loop_header_branch
                  %451 = sbr.rel (%p448) target = $region77
                $region74: #{tpu_custom_call.1} parent=69 // loop_body
                  %v455 = vld [vmem:[%s453] sm:$0xff]
                  %456 = vst [vmem:[%s454] sm:$0xff] %v455
                  %v457 = vld [vmem:[%s453 + $0x8] sm:$0xff]
                  %458 = vst [vmem:[%s454 + $0x8] sm:$0xff] %v457
                  %s459 = sadd.s32 1, %s452
                  %p460 = scmp.ge.s32.totalorder %s459, %s445
                  %s461 = scalar_select %p460, 0, %s459
                  %s462 = smul.u32 %s461, 16
                  %s463 = smul.u32 %s461, 16
                  %s464 = scalar_lea.vmem %s376, %s462 [#allocation2]
                  %s465 = scalar_lea.vmem %s387, %s463
                $region75: #{tpu_custom_call.1} parent=69 // loop_footer
                  %s449 = sadd.s32 %s447, 1
                $region76: #{tpu_custom_call.1} parent=69 // loop_footer_branch
                  %446 = sbr.rel target = $region72
                $region77: #{tpu_custom_call.1} parent=69 // loop_exit
                  _
                %s466 = sshrl.u32 %s383, 1
                %s467 = sand.u32 %s383, 1
                %s468 = smul.u32 %s466, 2
                %s469 = smul.u32 8, %s468
                %s470 = scalar_lea.vmem %s376, %s469 [#allocation2]
                %s471 = smul.u32 8, %s468
                %s472 = scalar_lea.vmem %s387, %s471
                // While loop
                $region78: #{tpu_custom_call.1} parent=69 // loop_pre_header
                  _
                $region79: #{tpu_custom_call.1} parent=69 // loop_header
                  %s474 = sphi 0, %s476
                  %p475 = scmp.ge.s32.totalorder %s474, %s467
                  %s479 = sphi 0, %s486
                  %s480 = sphi %s470, %s489
                  %s481 = sphi %s472, %s490
                $region80: #{tpu_custom_call.1} parent=69 // loop_header_branch
                  %478 = sbr.rel (%p475) target = $region84
                $region81: #{tpu_custom_call.1} parent=69 // loop_body
                  %v482 = vld [vmem:[%s480] sm:$0xff]
                  %483 = vst [vmem:[%s481] sm:$0xff] %v482
                  %s484 = sadd.s32 1, %s479
                  %p485 = scmp.ge.s32.totalorder %s484, %s467
                  %s486 = scalar_select %p485, 0, %s484
                  %s487 = smul.u32 %s486, 8
                  %s488 = smul.u32 %s486, 8
                  %s489 = scalar_lea.vmem %s470, %s487 [#allocation2]
                  %s490 = scalar_lea.vmem %s472, %s488
                $region82: #{tpu_custom_call.1} parent=69 // loop_footer
                  %s476 = sadd.s32 %s474, 1
                $region83: #{tpu_custom_call.1} parent=69 // loop_footer_branch
                  %473 = sbr.rel target = $region79
                $region84: #{tpu_custom_call.1} parent=69 // loop_exit
                  _
              $region70: #{tpu_custom_call.1} parent=47 // pred_fallthru
                _
              // Predicated region
              $region85: #{tpu_custom_call.1} parent=47 // pred_check
                _
              $region86: #{tpu_custom_call.1} parent=47 // pred_check_branch
                %492 = sbr.rel target = $region88
              $region87: #{tpu_custom_call.1} parent=47 // pred_region
                _
              $region88: #{tpu_custom_call.1} parent=47 // pred_fallthru
                _
            $region48: #{tpu_custom_call.1} parent=43 // pred_fallthru
              _
            // Predicated region
            $region49: #{tpu_custom_call.1} parent=43 // pred_check
              _
            $region50: #{tpu_custom_call.1} parent=43 // pred_check_branch
              %394 = sbr.rel target = $region52
            $region51: #{tpu_custom_call.1} parent=43 // pred_region
              %s396 = ssub.s32 256, 1
              %s397 = sshrl.u32 %s383, 1
              // While loop
              $region53: #{tpu_custom_call.1} parent=51 // loop_pre_header
                _
              $region54: #{tpu_custom_call.1} parent=51 // loop_header
                %s399 = sphi 0, %s401
                %p400 = scmp.ge.s32.totalorder %s399, %s397
                %s404 = sphi 0, %s413
                %s405 = sphi %s376, %s416
                %s406 = sphi %s387, %s417
              $region55: #{tpu_custom_call.1} parent=51 // loop_header_branch
                %403 = sbr.rel (%p400) target = $region59
              $region56: #{tpu_custom_call.1} parent=51 // loop_body
                %v407 = vld [vmem:[%s405] sm:%s396]
                %408 = vst [vmem:[%s406] sm:%s396] %v407
                %v409 = vld [vmem:[%s405 + $0x8] sm:%s396]
                %410 = vst [vmem:[%s406 + $0x8] sm:%s396] %v409
                %s411 = sadd.s32 1, %s404
                %p412 = scmp.ge.s32.totalorder %s411, %s397
                %s413 = scalar_select %p412, 0, %s411
                %s414 = smul.u32 %s413, 16
                %s415 = smul.u32 %s413, 16
                %s416 = scalar_lea.vmem %s376, %s414 [#allocation2]
                %s417 = scalar_lea.vmem %s387, %s415
              $region57: #{tpu_custom_call.1} parent=51 // loop_footer
                %s401 = sadd.s32 %s399, 1
              $region58: #{tpu_custom_call.1} parent=51 // loop_footer_branch
                %398 = sbr.rel target = $region54
              $region59: #{tpu_custom_call.1} parent=51 // loop_exit
                _
              %s418 = sshrl.u32 %s383, 1
              %s419 = sand.u32 %s383, 1
              %s420 = smul.u32 %s418, 2
              %s421 = smul.u32 8, %s420
              %s422 = scalar_lea.vmem %s376, %s421 [#allocation2]
              %s423 = smul.u32 8, %s420
              %s424 = scalar_lea.vmem %s387, %s423
              // While loop
              $region60: #{tpu_custom_call.1} parent=51 // loop_pre_header
                _
              $region61: #{tpu_custom_call.1} parent=51 // loop_header
                %s426 = sphi 0, %s428
                %p427 = scmp.ge.s32.totalorder %s426, %s419
                %s431 = sphi 0, %s438
                %s432 = sphi %s422, %s441
                %s433 = sphi %s424, %s442
              $region62: #{tpu_custom_call.1} parent=51 // loop_header_branch
                %430 = sbr.rel (%p427) target = $region66
              $region63: #{tpu_custom_call.1} parent=51 // loop_body
                %v434 = vld [vmem:[%s432] sm:%s396]
                %435 = vst [vmem:[%s433] sm:%s396] %v434
                %s436 = sadd.s32 1, %s431
                %p437 = scmp.ge.s32.totalorder %s436, %s419
                %s438 = scalar_select %p437, 0, %s436
                %s439 = smul.u32 %s438, 8
                %s440 = smul.u32 %s438, 8
                %s441 = scalar_lea.vmem %s422, %s439 [#allocation2]
                %s442 = scalar_lea.vmem %s424, %s440
              $region64: #{tpu_custom_call.1} parent=51 // loop_footer
                %s428 = sadd.s32 %s426, 1
              $region65: #{tpu_custom_call.1} parent=51 // loop_footer_branch
                %425 = sbr.rel target = $region61
              $region66: #{tpu_custom_call.1} parent=51 // loop_exit
                _
            $region52: #{tpu_custom_call.1} parent=43 // pred_fallthru
              _
          $region44: #{tpu_custom_call.1} parent=39 // pred_fallthru
            _
          %493 = vnop
        $region40: #{tpu_custom_call.1} parent=35 // pred_fallthru
          _
      $region36: #{tpu_custom_call.1} parent=5 // pred_fallthru
        _
      %p494 = scmp.le.s32.totalorder 2, %s10
      // Predicated region
      $region89: #{tpu_custom_call.1} parent=5 // pred_check
        %p495 = pneg %p494
      $region90: #{tpu_custom_call.1} parent=5 // pred_check_branch
        %497 = sbr.rel (%p495) target = $region92
      $region91: #{tpu_custom_call.1} parent=5 // pred_region
        %s498 = ssub.s32 %s10, 2
        // Predicated region
        $region93: #{tpu_custom_call.1} parent=91 // pred_check
          %p499 = pneg %p133
        $region94: #{tpu_custom_call.1} parent=91 // pred_check_branch
          %501 = sbr.rel (%p499) target = $region96
        $region95: #{tpu_custom_call.1} parent=91 // pred_region
          %s502 = sand.u32 %s118, 1
          %s503 = sand.u32 %s118, 1
          %s504 = smul.addr %s503, 16
          %s505 = scalar_lea.vmem [#allocation2], %s504
        $region96: #{tpu_custom_call.1} parent=91 // pred_fallthru
          _
      $region92: #{tpu_custom_call.1} parent=5 // pred_fallthru
        _
    $region6: #{tpu_custom_call.1} parent=1 // loop_footer
      %s14 = sadd.s32 1, %s10
    $region7: #{tpu_custom_call.1} parent=1 // loop_footer_branch
      %9 = sbr.rel target = $region3
    $region8: #{tpu_custom_call.1} parent=1 // loop_exit
      _

</llo_original>
